<compile_context>
chip_gen: v7x
topology: tpu7x:2x2x1
jax: 0.10.0
libtpu: 0.0.40
codegen_flags: <defaults>
</compile_context>

<pallas_src>
import functools

import jax
import jax.numpy as jnp
from jax.experimental import pallas as pl
from jax.experimental.pallas import tpu as pltpu

BN_EPS = 1e-5
_VMEM_LIMIT_BYTES = 48 * 1024 * 1024      # safe on v5e(128)/v6e(128)/v7x(64 MiB)
_IO_VMEM_BUDGET = 16 * 1024 * 1024        # double-buffered x-in + out tiles


def _seg_sum_kernel(start_ref, end_ref, x_ref, sum_ref, *, n_rows):
    """Per-segment sum of x over contiguous segments [start_b, end_b).

    Grid axis 0 ('arbitrary') tiles N; sum_ref is a (B, Cin) accumulator that
    stays VMEM-resident across the reduction (constant out index_map).
    """
    i = pl.program_id(0)
    tile_n = x_ref.shape[0]

    @pl.when(i == 0)
    def _():
        sum_ref[...] = jnp.zeros_like(sum_ref)

    # Global point index of each row of this tile, laid out along lanes.
    cols = i * tile_n + jax.lax.broadcasted_iota(jnp.int32, (1, tile_n), 1)
    # (B, tile_n) transposed one-hot of segment membership.
    oh_t = jnp.logical_and(cols >= start_ref[...], cols < end_ref[...])
    oh_t = oh_t.astype(jnp.float32)
    # Zero rows beyond N (ragged last tile): OOB VMEM contents are unspecified
    # and 0 * NaN would poison the accumulation.
    rows = i * tile_n + jax.lax.broadcasted_iota(jnp.int32, (tile_n, 1), 0)
    x_val = jnp.where(rows < n_rows, x_ref[...].astype(jnp.float32), 0.0)
    sum_ref[...] += jnp.dot(oh_t, x_val, preferred_element_type=jnp.float32)


def _transition_up_kernel(start_ref, end_ref, x_ref, w_ref, out_ref):
    """out = ReLU([x | one_hot(seg)] @ [[W1a'^T], [t]])  — one fused MXU dot.

    W1a' is linear1's x-part with eval-mode BatchNorm folded in; t is the
    per-segment additive term (linear2 output through linear1's g-part plus
    the folded bias).  The (tile, B) one-hot is built in-register, directly in
    the matmul dtype, from an iota and the segment start/end offsets — zero
    HBM traffic for the gather.  x is cast to the matmul dtype here so the
    wrapper never re-materializes it in HBM.
    """
    tile_n = x_ref.shape[0]
    md = w_ref.dtype
    rows = (pl.program_id(0) * tile_n
            + jax.lax.broadcasted_iota(jnp.int32, (tile_n, 1), 0))
    inseg = jnp.logical_and(rows >= start_ref[...], rows < end_ref[...])
    oh = jnp.where(inseg, jnp.ones((), md), jnp.zeros((), md))       # (T, B)
    xc = jnp.concatenate([x_ref[...].astype(md), oh], axis=1)        # (T, Cin+B)
    acc = jnp.dot(xc, w_ref[...], preferred_element_type=jnp.float32)
    # Ragged last tile: rows >= N compute garbage but their write-back is
    # masked by Pallas, so results are unaffected.
    out_ref[...] = jnp.maximum(acc, 0.0).astype(out_ref.dtype)


def _pick_tile(n, c_in, in_bytes, out_bytes, tile_n):
    """Tile rows: VMEM-bounded, multiple of 8, and >=2 grid steps (megacore)."""
    max_by_vmem = _IO_VMEM_BUDGET // (2 * c_in * (in_bytes + out_bytes))
    tile = min(int(tile_n), int(max_by_vmem))
    tile = max(8, (tile // 8) * 8)
    half = ((-(-n // 2)) + 7) // 8 * 8       # ceil(n/2) rounded up to 8
    tile = min(tile, half)                   # >=2 steps -> v7x's 2 TCs both work
    if tile >= n:
        tile = n                             # single block == full dim
    return tile


def transition_up(x, o, params, *, tile_n=8192, matmul_dtype=jnp.bfloat16,
                  out_dtype=jnp.float32):
    """TransitionUp forward, `pxo2 is None` branch.

    x: (N, Cin) float point features; o: (B,) int32 cumulative offsets
    (sorted, strictly increasing — no empty segments, matching the torch data
    layout; an empty segment is guarded with max(count,1) instead of torch's
    NaN).  matmul_dtype=bf16 (default) halves MXU work; use jnp.float32 for
    bit-level parity with the PyTorch module.  out_dtype halves write-back
    bytes when set to bf16.
    """
    N, Cin = x.shape
    B = o.shape[0]

    w1, b1 = params["w1"], params["b1"]
    gamma, beta = params["gamma1"], params["beta1"]
    rmean, rvar = params["rmean1"], params["rvar1"]
    w2, b2 = params["w2"], params["b2"]

    o_i32 = o.astype(jnp.int32)
    start = jnp.concatenate([jnp.zeros((1,), jnp.int32), o_i32[:-1]])
    start_row, end_row = start.reshape(1, B), o_i32.reshape(1, B)
    start_col, end_col = start.reshape(B, 1), o_i32.reshape(B, 1)

    in_bytes = jnp.dtype(x.dtype).itemsize
    out_bytes = jnp.dtype(out_dtype).itemsize
    tile = _pick_tile(N, Cin, in_bytes, out_bytes, tile_n)
    grid = (-(-N // tile),)

    # ---- pass 1: per-segment sums (Pallas streaming reduction, no scatter) --
    seg_sum = pl.pallas_call(
        functools.partial(_seg_sum_kernel, n_rows=N),
        out_shape=jax.ShapeDtypeStruct((B, Cin), jnp.float32),
        grid_spec=pltpu.PrefetchScalarGridSpec(
            num_scalar_prefetch=0,
            grid=grid,
            in_specs=[
                pl.BlockSpec((B, 1), lambda i: (0, 0)),       # seg starts
                pl.BlockSpec((B, 1), lambda i: (0, 0)),       # seg ends
                pl.BlockSpec((tile, Cin), lambda i: (i, 0)),  # x tile
            ],
            out_specs=pl.BlockSpec((B, Cin), lambda i: (0, 0)),
        ),
        compiler_params=pltpu.CompilerParams(
            dimension_semantics=("arbitrary",),
            vmem_limit_bytes=_VMEM_LIMIT_BYTES,
        ),
    )(start_col, end_col, x)

    # ---- tiny per-segment table + eval-BatchNorm fold (XLA, O(B*Cin^2)) -----
    counts = (o_i32 - start).astype(jnp.float32)
    seg_mean = seg_sum / jnp.maximum(counts, 1.0)[:, None]           # guard /0
    g = jnp.maximum(seg_mean @ w2.T + b2, 0.0)                       # linear2
    scale = gamma / jnp.sqrt(rvar + BN_EPS)
    w1a_f = w1[:, :Cin] * scale[:, None]                             # acts on x
    w1b_f = w1[:, Cin:] * scale[:, None]                             # acts on g
    b1_f = (b1 - rmean) * scale + beta
    t = g @ w1b_f.T + b1_f                                           # (B, Cin)
    # Fused weight: [x | one_hot] @ [[W1a'^T], [t]] == x@W1a'^T + one_hot@t
    w_cat = jnp.concatenate([w1a_f.T, t], axis=0).astype(matmul_dtype)

    # ---- pass 2: per-point output, tiled over N ("parallel" -> megacore) ----
    out = pl.pallas_call(
        _transition_up_kernel,
        out_shape=jax.ShapeDtypeStruct((N, Cin), out_dtype),
        grid_spec=pltpu.PrefetchScalarGridSpec(
            num_scalar_prefetch=0,
            grid=grid,
            in_specs=[
                pl.BlockSpec((1, B), lambda i: (0, 0)),             # seg starts
                pl.BlockSpec((1, B), lambda i: (0, 0)),             # seg ends
                pl.BlockSpec((tile, Cin), lambda i: (i, 0)),        # x tile
                pl.BlockSpec((Cin + B, Cin), lambda i: (0, 0)),     # W_cat
            ],
            out_specs=pl.BlockSpec((tile, Cin), lambda i: (i, 0)),
        ),
        compiler_params=pltpu.CompilerParams(
            dimension_semantics=("parallel",),
            vmem_limit_bytes=_VMEM_LIMIT_BYTES,
        ),
    )(start_row, end_row, x, w_cat)
    return out


def transition_up_ref(x, o, params):
    """Pure-JAX reference mirroring the PyTorch forward (pxo2 is None)."""
    w1, b1 = params["w1"], params["b1"]
    g1, be1, rm1, rv1 = (params["gamma1"], params["beta1"],
                         params["rmean1"], params["rvar1"])
    w2, b2 = params["w2"], params["b2"]

    pieces = []
    start = 0
    for i in range(o.shape[0]):
        end = int(o[i])
        cnt = end - start
        x_b = x[start:end, :]
        m = jnp.sum(x_b, axis=0, keepdims=True) / cnt
        g = jnp.maximum(m @ w2.T + b2, 0.0)
        pieces.append(jnp.concatenate([x_b, jnp.tile(g, (cnt, 1))], axis=1))
        start = end
    cat = jnp.concatenate(pieces, axis=0)
    lin = cat @ w1.T + b1
    bn = (lin - rm1) / jnp.sqrt(rv1 + BN_EPS) * g1 + be1
    return jnp.maximum(bn, 0.0)


if __name__ == "__main__":
    in_planes = 32
    o = jnp.array([16, 32], dtype=jnp.int32)   # cumulative point counts (B=2)
    N = int(o[-1])

    key = jax.random.PRNGKey(0)
    ks = jax.random.split(key, 9)
    x = jax.random.normal(ks[0], (N, in_planes), dtype=jnp.float32)

    # deterministic synthetic parameters (shapes from __init__, out_planes=None)
    params = {
        "w1": jax.random.normal(ks[1], (in_planes, 2 * in_planes)) * 0.1,
        "b1": jax.random.normal(ks[2], (in_planes,)) * 0.1,
        "gamma1": 1.0 + 0.1 * jax.random.normal(ks[3], (in_planes,)),
        "beta1": 0.1 * jax.random.normal(ks[4], (in_planes,)),
        "rmean1": 0.05 * jax.random.normal(ks[5], (in_planes,)),
        "rvar1": 0.5 + jnp.abs(jax.random.normal(ks[6], (in_planes,))),
        "w2": jax.random.normal(ks[7], (in_planes, in_planes)) * 0.1,
        "b2": jax.random.normal(ks[8], (in_planes,)) * 0.1,
    }
    params = {k: v.astype(jnp.float32) for k, v in params.items()}

    ref = transition_up_ref(x, o, params)

    # f32 MXU path: tight tolerance vs. the PyTorch-equivalent reference.
    f32_fn = jax.jit(functools.partial(transition_up, matmul_dtype=jnp.float32))
    out_f32 = jax.block_until_ready(f32_fn(x, o, params))
    assert out_f32.shape == (N, in_planes)
    assert jnp.allclose(out_f32, ref, atol=1e-4, rtol=1e-3), "f32 mismatch"

    # bf16 MXU path (performance default): looser tolerance.
    bf16_fn = jax.jit(functools.partial(transition_up))
    out_bf16 = jax.block_until_ready(bf16_fn(x, o, params))
    assert out_bf16.shape == (N, in_planes)
    assert jnp.allclose(out_bf16, ref, atol=5e-2, rtol=5e-2), "bf16 mismatch"

    print("KERNEL_OK")
</pallas_src>

<mosaic_0001>
module attributes {stable_mosaic.version = 11 : i64} {
  func.func @_seg_sum_kernel(%arg0: i32, %arg1: memref<2x1xi32, #tpu.memory_space<vmem>>, %arg2: memref<2x1xi32, #tpu.memory_space<vmem>>, %arg3: memref<16x32xf32, #tpu.memory_space<vmem>>, %arg4: memref<2x32xf32, #tpu.memory_space<vmem>>) attributes {dimension_semantics = [#tpu.dimension_semantics<arbitrary>], iteration_bounds = array<i64: 2>, scalar_prefetch = 0 : i64, scratch_operands = 0 : i64, tpu.core_type = #tpu.core_type<tc>, window_params = [{pipeline_mode = #tpu.pipeline_mode<synchronous>, transform_indices = @transform_0, window_bounds = array<i64: 2, 1>}, {pipeline_mode = #tpu.pipeline_mode<synchronous>, transform_indices = @transform_1, window_bounds = array<i64: 2, 1>}, {transform_indices = @transform_2, window_bounds = array<i64: 16, 32>}, {pipeline_mode = #tpu.pipeline_mode<synchronous>, transform_indices = @transform_3, window_bounds = array<i64: 2, 32>}]} {
    %c0_i32 = arith.constant 0 : i32
    %0 = arith.cmpi eq, %arg0, %c0_i32 : i32
    %1 = arith.extui %0 : i1 to i32
    %c0_i32_0 = arith.constant 0 : i32
    %2 = arith.cmpi ne, %1, %c0_i32_0 : i32
    scf.if %2 {
      %cst_12 = arith.constant 0.000000e+00 : f32
      %33 = vector.broadcast %cst_12 : f32 to vector<2x32xf32>
      %c0_13 = arith.constant 0 : index
      %c0_14 = arith.constant 0 : index
      %34 = vector.load %arg4[%c0_13, %c0_14] : memref<2x32xf32, #tpu.memory_space<vmem>>, vector<2x32xf32>
      tpu.vector_store %arg4[%c0_13, %c0_14], %33 {strides = array<i32>} : memref<2x32xf32, #tpu.memory_space<vmem>>, vector<2x32xf32>,
    } else {
    }
    %c16_i32 = arith.constant 16 : i32
    %3 = arith.muli %arg0, %c16_i32 : i32
    %4 = tpu.iota {dimensions = array<i32: 1>} : vector<1x16xi32>
    %5 = vector.broadcast %3 : i32 to vector<1x16xi32>
    %6 = arith.addi %5, %4 : vector<1x16xi32>
    %c0 = arith.constant 0 : index
    %c0_1 = arith.constant 0 : index
    %7 = vector.load %arg1[%c0, %c0_1] : memref<2x1xi32, #tpu.memory_space<vmem>>, vector<2x1xi32>
    %8 = vector.broadcast %6 : vector<1x16xi32> to vector<2x16xi32>
    %9 = vector.broadcast %7 : vector<2x1xi32> to vector<2x16xi32>
    %10 = arith.cmpi sge, %8, %9 : vector<2x16xi32>
    %c0_2 = arith.constant 0 : index
    %c0_3 = arith.constant 0 : index
    %11 = vector.load %arg2[%c0_2, %c0_3] : memref<2x1xi32, #tpu.memory_space<vmem>>, vector<2x1xi32>
    %12 = vector.broadcast %6 : vector<1x16xi32> to vector<2x16xi32>
    %13 = vector.broadcast %11 : vector<2x1xi32> to vector<2x16xi32>
    %14 = arith.cmpi slt, %12, %13 : vector<2x16xi32>
    %15 = arith.andi %10, %14 : vector<2x16xi1>
    %16 = arith.extui %15 : vector<2x16xi1> to vector<2x16xi32>
    %17 = arith.sitofp %16 : vector<2x16xi32> to vector<2x16xf32>
    %c16_i32_4 = arith.constant 16 : i32
    %18 = arith.muli %arg0, %c16_i32_4 : i32
    %19 = tpu.iota {dimensions = array<i32: 0>} : vector<16x1xi32>
    %20 = vector.broadcast %18 : i32 to vector<16x1xi32>
    %21 = arith.addi %20, %19 : vector<16x1xi32>
    %c32_i32 = arith.constant 32 : i32
    %22 = vector.broadcast %c32_i32 : i32 to vector<16x1xi32>
    %23 = arith.cmpi slt, %21, %22 : vector<16x1xi32>
    %c0_5 = arith.constant 0 : index
    %c0_6 = arith.constant 0 : index
    %24 = vector.load %arg3[%c0_5, %c0_6] : memref<16x32xf32, #tpu.memory_space<vmem>>, vector<16x32xf32>
    %cst = arith.constant 0.000000e+00 : f32
    %25 = vector.shape_cast %23 : vector<16x1xi1> to vector<16x1xi1>
    %26 = vector.broadcast %25 : vector<16x1xi1> to vector<16x32xi1>
    %27 = vector.broadcast %cst : f32 to vector<16x32xf32>
    %28 = arith.select %26, %24, %27 : vector<16x32xi1>, vector<16x32xf32>
    %c0_7 = arith.constant 0 : index
    %c0_8 = arith.constant 0 : index
    %29 = vector.load %arg4[%c0_7, %c0_8] : memref<2x32xf32, #tpu.memory_space<vmem>>, vector<2x32xf32>
    %cst_9 = arith.constant dense<0.000000e+00> : vector<2x32xf32>
    %30 = tpu.matmul %17, %28, %cst_9 {dimension_numbers = #tpu.dot_dimension_numbers<[1], [0], [0], [1], [0, 0, 1, 1], [], []>} : vector<2x16xf32>, vector<16x32xf32>, vector<2x32xf32> -> vector<2x32xf32>
    %31 = arith.addf %29, %30 : vector<2x32xf32>
    %c0_10 = arith.constant 0 : index
    %c0_11 = arith.constant 0 : index
    %32 = vector.load %arg4[%c0_10, %c0_11] : memref<2x32xf32, #tpu.memory_space<vmem>>, vector<2x32xf32>
    tpu.vector_store %arg4[%c0_10, %c0_11], %31 {strides = array<i32>} : memref<2x32xf32, #tpu.memory_space<vmem>>, vector<2x32xf32>,
    return
  }
  func.func @transform_0(%arg0: i32) -> (i32, i32) {
    %c0_i32 = arith.constant 0 : i32
    %c0_i32_0 = arith.constant 0 : i32
    %c0_i32_1 = arith.constant 0 : i32
    return %c0_i32, %c0_i32_0 : i32, i32
  }
  func.func @transform_1(%arg0: i32) -> (i32, i32) {
    %c0_i32 = arith.constant 0 : i32
    %c0_i32_0 = arith.constant 0 : i32
    %c0_i32_1 = arith.constant 0 : i32
    return %c0_i32, %c0_i32_0 : i32, i32
  }
  func.func @transform_2(%arg0: i32) -> (i32, i32) {
    %c0_i32 = arith.constant 0 : i32
    %c0_i32_0 = arith.constant 0 : i32
    return %arg0, %c0_i32 : i32, i32
  }
  func.func @transform_3(%arg0: i32) -> (i32, i32) {
    %c0_i32 = arith.constant 0 : i32
    %c0_i32_0 = arith.constant 0 : i32
    %c0_i32_1 = arith.constant 0 : i32
    return %c0_i32, %c0_i32_0 : i32, i32
  }
}

module attributes {stable_mosaic.version = 11 : i64} {
  func.func @_transition_up_kernel(%arg0: i32, %arg1: memref<1x2xi32, #tpu.memory_space<vmem>>, %arg2: memref<1x2xi32, #tpu.memory_space<vmem>>, %arg3: memref<16x32xf32, #tpu.memory_space<vmem>>, %arg4: memref<34x32xf32, #tpu.memory_space<vmem>>, %arg5: memref<16x32xf32, #tpu.memory_space<vmem>>) attributes {dimension_semantics = [#tpu.dimension_semantics<parallel>], iteration_bounds = array<i64: 2>, scalar_prefetch = 0 : i64, scratch_operands = 0 : i64, tpu.core_type = #tpu.core_type<tc>, window_params = [{pipeline_mode = #tpu.pipeline_mode<synchronous>, transform_indices = @transform_0, window_bounds = array<i64: 1, 2>}, {pipeline_mode = #tpu.pipeline_mode<synchronous>, transform_indices = @transform_1, window_bounds = array<i64: 1, 2>}, {transform_indices = @transform_2, window_bounds = array<i64: 16, 32>}, {pipeline_mode = #tpu.pipeline_mode<synchronous>, transform_indices = @transform_3, window_bounds = array<i64: 34, 32>}, {transform_indices = @transform_4, window_bounds = array<i64: 16, 32>}]} {
    %c16_i32 = arith.constant 16 : i32
    %0 = arith.muli %arg0, %c16_i32 : i32
    %1 = tpu.iota {dimensions = array<i32: 0>} : vector<16x1xi32>
    %2 = vector.broadcast %0 : i32 to vector<16x1xi32>
    %3 = arith.addi %2, %1 : vector<16x1xi32>
    %c0 = arith.constant 0 : index
    %c0_0 = arith.constant 0 : index
    %4 = vector.load %arg1[%c0, %c0_0] : memref<1x2xi32, #tpu.memory_space<vmem>>, vector<1x2xi32>
    %5 = vector.broadcast %3 : vector<16x1xi32> to vector<16x2xi32>
    %6 = vector.broadcast %4 : vector<1x2xi32> to vector<16x2xi32>
    %7 = arith.cmpi sge, %5, %6 : vector<16x2xi32>
    %c0_1 = arith.constant 0 : index
    %c0_2 = arith.constant 0 : index
    %8 = vector.load %arg2[%c0_1, %c0_2] : memref<1x2xi32, #tpu.memory_space<vmem>>, vector<1x2xi32>
    %9 = vector.broadcast %3 : vector<16x1xi32> to vector<16x2xi32>
    %10 = vector.broadcast %8 : vector<1x2xi32> to vector<16x2xi32>
    %11 = arith.cmpi slt, %9, %10 : vector<16x2xi32>
    %12 = arith.andi %7, %11 : vector<16x2xi1>
    %cst = arith.constant 1.000000e+00 : f32
    %cst_3 = arith.constant 0.000000e+00 : f32
    %13 = vector.broadcast %cst : f32 to vector<16x2xf32>
    %14 = vector.broadcast %cst_3 : f32 to vector<16x2xf32>
    %15 = arith.select %12, %13, %14 : vector<16x2xi1>, vector<16x2xf32>
    %c0_4 = arith.constant 0 : index
    %c0_5 = arith.constant 0 : index
    %16 = vector.load %arg3[%c0_4, %c0_5] : memref<16x32xf32, #tpu.memory_space<vmem>>, vector<16x32xf32>
    %17 = tpu.concatenate %16, %15 in 1 : vector<16x32xf32>, vector<16x2xf32> -> vector<16x34xf32>
    %c0_6 = arith.constant 0 : index
    %c0_7 = arith.constant 0 : index
    %18 = vector.load %arg4[%c0_6, %c0_7] : memref<34x32xf32, #tpu.memory_space<vmem>>, vector<34x32xf32>
    %cst_8 = arith.constant dense<0.000000e+00> : vector<16x32xf32>
    %19 = tpu.matmul %17, %18, %cst_8 {dimension_numbers = #tpu.dot_dimension_numbers<[1], [0], [0], [1], [0, 0, 1, 1], [], []>} : vector<16x34xf32>, vector<34x32xf32>, vector<16x32xf32> -> vector<16x32xf32>
    %cst_9 = arith.constant 0.000000e+00 : f32
    %20 = vector.broadcast %cst_9 : f32 to vector<16x32xf32>
    %21 = arith.maximumf %19, %20 : vector<16x32xf32>
    %c0_10 = arith.constant 0 : index
    %c0_11 = arith.constant 0 : index
    %22 = vector.load %arg5[%c0_10, %c0_11] : memref<16x32xf32, #tpu.memory_space<vmem>>, vector<16x32xf32>
    tpu.vector_store %arg5[%c0_10, %c0_11], %21 {strides = array<i32>} : memref<16x32xf32, #tpu.memory_space<vmem>>, vector<16x32xf32>,
    return
  }
  func.func @transform_0(%arg0: i32) -> (i32, i32) {
    %c0_i32 = arith.constant 0 : i32
    %c0_i32_0 = arith.constant 0 : i32
    %c0_i32_1 = arith.constant 0 : i32
    return %c0_i32, %c0_i32_0 : i32, i32
  }
  func.func @transform_1(%arg0: i32) -> (i32, i32) {
    %c0_i32 = arith.constant 0 : i32
    %c0_i32_0 = arith.constant 0 : i32
    %c0_i32_1 = arith.constant 0 : i32
    return %c0_i32, %c0_i32_0 : i32, i32
  }
  func.func @transform_2(%arg0: i32) -> (i32, i32) {
    %c0_i32 = arith.constant 0 : i32
    %c0_i32_0 = arith.constant 0 : i32
    return %arg0, %c0_i32 : i32, i32
  }
  func.func @transform_3(%arg0: i32) -> (i32, i32) {
    %c0_i32 = arith.constant 0 : i32
    %c0_i32_0 = arith.constant 0 : i32
    %c0_i32_1 = arith.constant 0 : i32
    return %c0_i32, %c0_i32_0 : i32, i32
  }
  func.func @transform_4(%arg0: i32) -> (i32, i32) {
    %c0_i32 = arith.constant 0 : i32
    %c0_i32_0 = arith.constant 0 : i32
    return %arg0, %c0_i32 : i32, i32
  }
}

</mosaic_0001>

<llo_original>
// kernel: transition_up.2
$region0: #{transition_up.2}
  #allocation0 [shape = 'u32[]', space=smem, size = 0x4, offset = 0x4, fixed_abs, tag = 'smem constant byte address 0x4 - core index']
  #allocation1 [shape = 'u32[144,128]{1,0:T(1,128)}', space=vmem, size = 0x12000, scoped, tag = 'internal scratch']
  %s0 = inlined_call_operand.vmem [shape: s32[2,1], index: 0, kind: input, shape index: {}]
  %s1 = inlined_call_operand.vmem [shape: s32[2,1], index: 1, kind: input, shape index: {}]
  %s2 = inlined_call_operand.vmem [shape: f32[32,32], index: 2, kind: input, shape index: {}]
  %s3 = inlined_call_operand.vmem [shape: f32[2,32], index: 3, kind: output, shape index: {}]
  %s4 = sld [smem:[#allocation0]]
  $region49: #{transition_up.2} parent=0
    _
  %s6 = ssub.s32 1, %s4
  %s7 = scalar_select 0, %s6, %s4
  loop: start=0, step=1, limit=4
  $region2: #{transition_up.2} parent=0 // loop_pre_header
    _
  $region3: #{transition_up.2} parent=0 // loop_header
    %s9 = sphi 0, %s13
    %p10 = scmp.ge.s32.totalorder %s9, 4
    %s17 = sphi 0, %s17
    %s19 = sphi 0, %s17
    %s20 = sphi 0, %s19
    %s34 = sphi 0, %s20
    %s38 = sphi 0, %s38
    %s40 = sphi 0, %s38
    %s41 = sphi 0, %s40
    %s55 = sphi 0, %s41
    %s61 = sphi 0, %s63
    %s64 = sphi 0, %s61
    %s65 = sphi 0, %s64
    %s81 = sphi 0, %s65
    %s85 = sphi 0, %s85
    %s87 = sphi 0, %s85
    %s88 = sphi 0, %s87
    %s102 = sphi 0, %s88
  $region4: #{transition_up.2} parent=0 // loop_header_branch
    %12 = sbr.rel (%p10) target = $region8
  $region5: #{transition_up.2} parent=0 // loop_body
    %s14 = ssub.s32 %s9, 1
    %s15 = ssub.s32 %s9, 2
    %s16 = sadd.s32 %s9, 1
    %s18 = sadd.s32 %s17, 1
    %p21 = scmp.eq.s32.totalorder %s9, 1
    %p22 = scmp.ne.s32.totalorder %s17, %s19
    %p23 = scmp.eq.s32.totalorder %s9, 0
    %p24 = por %p22, %p23
    %p25 = scmp.ne.s32.totalorder %s17, %s19
    %p26 = scmp.eq.s32.totalorder %s14, 1
    %p27 = por %p25, %p26
    %p28 = scmp.ne.s32.totalorder %s19, %s20
    %p29 = scmp.eq.s32.totalorder %s14, 0
    %p30 = por %p28, %p29
    %p31 = scmp.ne.s32.totalorder %s19, %s20
    %p32 = scmp.eq.s32.totalorder %s15, 1
    %p33 = por %p31, %p32
    %p35 = scmp.ne.s32.totalorder %s20, %s34
    %p36 = scmp.eq.s32.totalorder %s15, 0
    %p37 = por %p35, %p36
    %s39 = sadd.s32 %s38, 1
    %p42 = scmp.eq.s32.totalorder %s9, 1
    %p43 = scmp.ne.s32.totalorder %s38, %s40
    %p44 = scmp.eq.s32.totalorder %s9, 0
    %p45 = por %p43, %p44
    %p46 = scmp.ne.s32.totalorder %s38, %s40
    %p47 = scmp.eq.s32.totalorder %s14, 1
    %p48 = por %p46, %p47
    %p49 = scmp.ne.s32.totalorder %s40, %s41
    %p50 = scmp.eq.s32.totalorder %s14, 0
    %p51 = por %p49, %p50
    %p52 = scmp.ne.s32.totalorder %s40, %s41
    %p53 = scmp.eq.s32.totalorder %s15, 1
    %p54 = por %p52, %p53
    %p56 = scmp.ne.s32.totalorder %s41, %s55
    %p57 = scmp.eq.s32.totalorder %s15, 0
    %p58 = por %p56, %p57
    %s59 = ssub.s32 %s9, %s16
    %p60 = scmp.eq.s32.totalorder %s59, 0
    %s62 = sadd.s32 %s61, 1
    %s63 = scalar_select %p60, %s61, %s62
    %p66 = pneg %p60
    %p67 = scmp.eq.s32.totalorder %s9, 1
    %p68 = por %p66, %p67
    %p69 = scmp.ne.s32.totalorder %s61, %s64
    %p70 = scmp.eq.s32.totalorder %s9, 0
    %p71 = por %p69, %p70
    %p72 = scmp.ne.s32.totalorder %s61, %s64
    %p73 = scmp.eq.s32.totalorder %s14, 1
    %p74 = por %p72, %p73
    %p75 = scmp.ne.s32.totalorder %s64, %s65
    %p76 = scmp.eq.s32.totalorder %s14, 0
    %p77 = por %p75, %p76
    %p78 = scmp.ne.s32.totalorder %s64, %s65
    %p79 = scmp.eq.s32.totalorder %s15, 1
    %p80 = por %p78, %p79
    %p82 = scmp.ne.s32.totalorder %s65, %s81
    %p83 = scmp.eq.s32.totalorder %s15, 0
    %p84 = por %p82, %p83
    %s86 = sadd.s32 %s85, 1
    %p89 = scmp.eq.s32.totalorder %s9, 1
    %p90 = scmp.ne.s32.totalorder %s85, %s87
    %p91 = scmp.eq.s32.totalorder %s9, 0
    %p92 = por %p90, %p91
    %p93 = scmp.ne.s32.totalorder %s85, %s87
    %p94 = scmp.eq.s32.totalorder %s14, 1
    %p95 = por %p93, %p94
    %p96 = scmp.ne.s32.totalorder %s87, %s88
    %p97 = scmp.eq.s32.totalorder %s14, 0
    %p98 = por %p96, %p97
    %p99 = scmp.ne.s32.totalorder %s87, %s88
    %p100 = scmp.eq.s32.totalorder %s15, 1
    %p101 = por %p99, %p100
    %p103 = scmp.ne.s32.totalorder %s88, %s102
    %p104 = scmp.eq.s32.totalorder %s15, 0
    %p105 = por %p103, %p104
    %p106 = scmp.le.s32.totalorder 1, %s9
    %p107 = scmp.lt.s32.totalorder %s9, 3
    %p108 = pnand %p106, %p107
    %p109 = pneg %p108
    // Predicated region
    $region9: #{transition_up.2} parent=5 // pred_check
      _
    $region10: #{transition_up.2} parent=5 // pred_check_branch
      %111 = sbr.rel (%p108) target = $region12
    $region11: #{transition_up.2} parent=5 // pred_region
      %s112 = ssub.s32 %s9, 1
      // Predicated region
      $region13: #{transition_up.2} parent=11 // pred_check
        %p113 = pneg %p30
      $region14: #{transition_up.2} parent=11 // pred_check_branch
        %115 = sbr.rel (%p113) target = $region16
      $region15: #{transition_up.2} parent=11 // pred_region
        _
      $region16: #{transition_up.2} parent=11 // pred_fallthru
        _
      // Predicated region
      $region17: #{transition_up.2} parent=11 // pred_check
        %p116 = pneg %p51
      $region18: #{transition_up.2} parent=11 // pred_check_branch
        %118 = sbr.rel (%p116) target = $region20
      $region19: #{transition_up.2} parent=11 // pred_region
        _
      $region20: #{transition_up.2} parent=11 // pred_fallthru
        _
    $region12: #{transition_up.2} parent=5 // pred_fallthru
      _
    %p119 = scmp.lt.s32.totalorder %s9, 2
    // Predicated region
    $region21: #{transition_up.2} parent=5 // pred_check
      %p120 = pneg %p119
    $region22: #{transition_up.2} parent=5 // pred_check_branch
      %122 = sbr.rel (%p120) target = $region24
    $region23: #{transition_up.2} parent=5 // pred_region
      // Predicated region
      $region25: #{transition_up.2} parent=23 // pred_check
        %p123 = pneg %p71
      $region26: #{transition_up.2} parent=23 // pred_check_branch
        %125 = sbr.rel (%p123) target = $region28
      $region27: #{transition_up.2} parent=23 // pred_region
        %s126 = smul.u32 2, %s9
        %p127 = scmp.lt.s32.totalorder %s126, 3
        %s128 = scalar_select %p127, %s126, 3
        %s129 = smul.addr %s128, 8
        %s130 = scalar_lea.vmem %s2, %s129
        %s131 = smul.u32 2, %s9
      $region28: #{transition_up.2} parent=23 // pred_fallthru
        _
    $region24: #{transition_up.2} parent=5 // pred_fallthru
      _
    %p132 = scmp.le.s32.totalorder 1, %s9
    %p133 = scmp.lt.s32.totalorder %s9, 3
    %p134 = pnand %p132, %p133
    %p135 = pneg %p134
    // Predicated region
    $region29: #{transition_up.2} parent=5 // pred_check
      _
    $region30: #{transition_up.2} parent=5 // pred_check_branch
      %137 = sbr.rel (%p134) target = $region32
    $region31: #{transition_up.2} parent=5 // pred_region
      %s138 = ssub.s32 %s9, 1
      %p139 = pneg %p30
      %p140 = pneg %p27
      %p141 = pneg %p51
      %p142 = pneg %p48
      %s143 = smul.u32 2, %s14
      %p144 = scmp.lt.s32.totalorder %s143, 3
      %s145 = scalar_select %p144, %s143, 3
      %s146 = smul.addr %s145, 8
      %s147 = scalar_lea.vmem %s2, %s146
      %p148 = pneg %p77
      %p149 = pneg %p74
      %p150 = pneg %p98
      %p151 = pneg %p95
      %s152 = smul.u32 2, %s14
      %p153 = scmp.lt.s32.totalorder %s152, 3
      %s154 = scalar_select %p153, %s152, 3
      %s155 = smul.addr %s154, 8
      %s156 = scalar_lea.vmem %s2, %s155
      %s157 = smul.u32 2, %s14
      %p158 = scmp.eq.s32.totalorder %s14, 0
      // Predicated region
      $region33: #{transition_up.2} parent=31 // pred_check
        %p159 = pneg %p158
      $region34: #{transition_up.2} parent=31 // pred_check_branch
        %161 = sbr.rel (%p159) target = $region36
      $region35: #{transition_up.2} parent=31 // pred_region
        %vm162 = vcmask 254976
        %163 = vst.msk [vmem:[%s3] sm:$0x3] %vm162, 0.0
      $region36: #{transition_up.2} parent=31 // pred_fallthru
        _
      %s164 = smul.u32 %s14, 16
      %v165 = vlaneseq
      %v166 = vand.u32 %v165, 127
      %v167 = vstv %s164
      %v168 = vadd.s32 %v167, %v166
      %v169 = vld [vmem:[%s0] sm:$0x3]
      %170 = vset.pattern.permute.xlu0 0
      %171 = vperm.xlu0 %170, %v169
      %v172 = vpop.permute.xlu0 %171
      %vm173 = vcmp.ge.s32.totalorder %v168, %v172
      %v174 = vld [vmem:[%s1] sm:$0x3]
      %175 = vset.pattern.permute.xlu0 0
      %176 = vperm.xlu0 %175, %v174
      %v177 = vpop.permute.xlu0 %176
      %vm178 = vcmp.lt.s32.totalorder %v168, %v177
      %vm179 = vmand %vm173, %vm178
      %v180 = vsel %vm179, 1, 0
      %v181 = vcvt.s32.f32 %v180
      %v182 = vlaneseq
      %v183 = vshrl.u32 %v182, 7
      %v184 = vadd.s32 %v183, 8
      %v185 = vadd.s32 %v167, %v183
      %v186 = vadd.s32 %v167, %v184
      %vm187 = vcmp.lt.s32.totalorder %v185, 32
      %vm188 = vcmp.lt.s32.totalorder %v186, 32
      %v189 = vld [vmem:[%s156] sm:$0xff]
      %v190 = vld [vmem:[%s156 + $0x8] sm:$0xff]
      %v191 = vsel %vm187, 1, 0
      %v192 = vsel %vm188, 1, 0
      %vm193 = vcmp.eq.s32.totalorder %v191, 1
      %vm194 = vcmp.eq.s32.totalorder %v192, 1
      %v195 = vsel %vm193, %v189, 0.0
      %v196 = vsel %vm194, %v190, 0.0
      %v197 = vld [vmem:[%s3] sm:$0x3]
      %vm198 = vcmask 130048
      %v200 = vsel %vm198, %v181, 0
      %202 = vmatprep.subr.mxu0 0.0
      %203 = vmatpush1.msra.mxu0 %v195
      %204 = vmatprep.subr.mxu0 0.0
      %205 = vmatpush1.msra.mxu0 %v196
      %206 = vmatprep.subr.mxu0 0.0
      %207 = vmatpush1.msra.mxu0 0.0
      %208 = vmatprep.subr.mxu0 0.0
      %209 = vmatpush1.msra.mxu0 0.0
      %210 = vmatprep.subr.mxu0 0.0
      %211 = vmatpush1.msra.mxu0 0.0
      %212 = vmatprep.subr.mxu0 0.0
      %213 = vmatpush1.msra.mxu0 0.0
      %214 = vmatprep.subr.mxu0 0.0
      %215 = vmatpush1.msra.mxu0 0.0
      %216 = vmatprep.subr.mxu0 0.0
      %217 = vmatpush1.msra.mxu0 0.0
      %218 = vmatprep.subr.mxu0 0.0
      %219 = vmatpush1.msra.mxu0 0.0
      %220 = vmatprep.subr.mxu0 0.0
      %221 = vmatpush1.msra.mxu0 0.0
      %222 = vmatprep.subr.mxu0 0.0
      %223 = vmatpush1.msra.mxu0 0.0
      %224 = vmatprep.subr.mxu0 0.0
      %225 = vmatpush1.msra.mxu0 0.0
      %226 = vmatprep.subr.mxu0 0.0
      %227 = vmatpush1.msra.mxu0 0.0
      %228 = vmatprep.subr.mxu0 0.0
      %229 = vmatpush1.msra.mxu0 0.0
      %230 = vmatprep.subr.mxu0 0.0
      %231 = vmatpush1.msra.mxu0 0.0
      %232 = vmatprep.subr.mxu0 0.0
      %233 = vmatpush1.msra.mxu0 0.0
      %234 = vmatprep.subr.mxu0 0.0
      %235 = vmatpush1.msra.mxu0 0.0
      %236 = vmatprep.subr.mxu0 0.0
      %237 = vmatpush1.msra.mxu0 0.0
      %238 = vmatprep.subr.mxu0 0.0
      %239 = vmatpush1.msra.mxu0 0.0
      %240 = vmatprep.subr.mxu0 0.0
      %241 = vmatpush1.msra.mxu0 0.0
      %242 = vmatprep.subr.mxu0 0.0
      %243 = vmatpush1.msra.mxu0 0.0
      %244 = vmatprep.subr.mxu0 0.0
      %245 = vmatpush1.msra.mxu0 0.0
      %246 = vmatprep.subr.mxu0 0.0
      %247 = vmatpush1.msra.mxu0 0.0
      %248 = vmatprep.subr.mxu0 0.0
      %249 = vmatpush1.msra.mxu0 0.0
      %250 = vmatprep.subr.mxu0 0.0
      %251 = vmatpush1.msra.mxu0 0.0
      %252 = vmatprep.subr.mxu0 0.0
      %253 = vmatpush1.msra.mxu0 0.0
      %254 = vmatprep.subr.mxu0 0.0
      %255 = vmatpush1.msra.mxu0 0.0
      %256 = vmatprep.subr.mxu0 0.0
      %257 = vmatpush1.msra.mxu0 0.0
      %258 = vmatprep.subr.mxu0 0.0
      %259 = vmatpush1.msra.mxu0 0.0
      %260 = vmatprep.subr.mxu0 0.0
      %261 = vmatpush1.msra.mxu0 0.0
      %262 = vmatprep.subr.mxu0 0.0
      %263 = vmatpush1.msra.mxu0 0.0
      %264 = vmatprep.subr.mxu0 0.0
      %265 = vmatpush1.msra.mxu0 0.0
      %266 = vmatprep.mubr.f32.mxu0 0.0
      %267 = vmatmul.mubr.f32.gmra.mrb[0].mxu0 %v200
      %v268 = vpop.f32.mrb[0].mxu0
      %v269 = vadd.f32 0.0, %v268
      %v270 = vpop.f32.mrb[0].mxu0
      %271 = vdwg.mxu0
      %v272 = vadd.f32 %v197, %v269
      %vm273 = vcmask 254976
      %274 = vst.msk [vmem:[%s3] sm:$0x3] %vm273, %v272
      // Predicated region
      $region37: #{transition_up.2} parent=31 // pred_check
        %p275 = pneg %p95
      $region38: #{transition_up.2} parent=31 // pred_check_branch
        %277 = sbr.rel (%p275) target = $region40
      $region39: #{transition_up.2} parent=31 // pred_region
        _
      $region40: #{transition_up.2} parent=31 // pred_fallthru
        _
      // Predicated region
      $region41: #{transition_up.2} parent=31 // pred_check
        %p278 = pneg %p95
      $region42: #{transition_up.2} parent=31 // pred_check_branch
        %280 = sbr.rel (%p278) target = $region44
      $region43: #{transition_up.2} parent=31 // pred_region
        _
      $region44: #{transition_up.2} parent=31 // pred_fallthru
        _
    $region32: #{transition_up.2} parent=5 // pred_fallthru
      _
    %p281 = scmp.le.s32.totalorder 2, %s9
    // Predicated region
    $region45: #{transition_up.2} parent=5 // pred_check
      %p282 = pneg %p281
    $region46: #{transition_up.2} parent=5 // pred_check_branch
      %284 = sbr.rel (%p282) target = $region48
    $region47: #{transition_up.2} parent=5 // pred_region
      %s285 = ssub.s32 %s9, 2
    $region48: #{transition_up.2} parent=5 // pred_fallthru
      _
  $region6: #{transition_up.2} parent=0 // loop_footer
    %s13 = sadd.s32 1, %s9
  $region7: #{transition_up.2} parent=0 // loop_footer_branch
    %8 = sbr.rel target = $region3
  $region8: #{transition_up.2} parent=0 // loop_exit
    _

// kernel: transition_up.3
$region0: #{transition_up.3}
  #allocation0 [shape = 'u32[]', space=smem, size = 0x4, offset = 0x4, fixed_abs, tag = 'smem constant byte address 0x4 - core index']
  #allocation1 [shape = 'u32[144,128]{1,0:T(1,128)}', space=vmem, size = 0x12000, scoped, tag = 'internal scratch']
  %s0 = inlined_call_operand.vmem [shape: s32[1,2], index: 0, kind: input, shape index: {}]
  %s1 = inlined_call_operand.vmem [shape: s32[1,2], index: 1, kind: input, shape index: {}]
  %s2 = inlined_call_operand.vmem [shape: f32[32,32], index: 2, kind: input, shape index: {}]
  %s3 = inlined_call_operand.vmem [shape: f32[34,32], index: 3, kind: input, shape index: {}]
  %s4 = inlined_call_operand.hbm [shape: f32[32,32], index: 4, kind: output, shape index: {}]
  %s5 = sld [smem:[#allocation0]]
  $region49: #{transition_up.3} parent=0
    _
  %s7 = ssub.s32 1, %s5
  %s8 = scalar_select 0, %s7, %s5
  $region1: #{transition_up.3} parent=0
    #allocation2 [shape = 'u8[16384]{0}', space=vmem, size = 0x4000, scoped, tag = 'output window, operand 0']
    #allocation3 [shape = 's32[2]{0}', space=sflag, size = 0x8, scoped, tag = 'scoped memory for transition_up.3']
    %9 = vsyncpa [#allocation3], 0
    %s10 = scalar_lea.sflag [#allocation3], 1
    %11 = vsyncpa %s10, 0
    loop: start=0, step=1, limit=4
    $region2: #{transition_up.3} parent=1 // loop_pre_header
      _
    $region3: #{transition_up.3} parent=1 // loop_header
      %s13 = sphi 0, %s17
      %p14 = scmp.ge.s32.totalorder %s13, 4
      %s21 = sphi 0, %s21
      %s23 = sphi 0, %s21
      %s24 = sphi 0, %s23
      %s38 = sphi 0, %s24
      %s42 = sphi 0, %s42
      %s44 = sphi 0, %s42
      %s45 = sphi 0, %s44
      %s59 = sphi 0, %s45
      %s65 = sphi 0, %s67
      %s68 = sphi 0, %s65
      %s69 = sphi 0, %s68
      %s85 = sphi 0, %s69
      %s89 = sphi 0, %s89
      %s91 = sphi 0, %s89
      %s92 = sphi 0, %s91
      %s106 = sphi 0, %s92
      %s112 = sphi 0, %s114
      %s115 = sphi 0, %s112
      %s116 = sphi 0, %s115
      %s132 = sphi 0, %s116
    $region4: #{transition_up.3} parent=1 // loop_header_branch
      %16 = sbr.rel (%p14) target = $region8
    $region5: #{transition_up.3} parent=1 // loop_body
      %s18 = ssub.s32 %s13, 1
      %s19 = ssub.s32 %s13, 2
      %s20 = sadd.s32 %s13, 1
      %s22 = sadd.s32 %s21, 1
      %p25 = scmp.eq.s32.totalorder %s13, 1
      %p26 = scmp.ne.s32.totalorder %s21, %s23
      %p27 = scmp.eq.s32.totalorder %s13, 0
      %p28 = por %p26, %p27
      %p29 = scmp.ne.s32.totalorder %s21, %s23
      %p30 = scmp.eq.s32.totalorder %s18, 1
      %p31 = por %p29, %p30
      %p32 = scmp.ne.s32.totalorder %s23, %s24
      %p33 = scmp.eq.s32.totalorder %s18, 0
      %p34 = por %p32, %p33
      %p35 = scmp.ne.s32.totalorder %s23, %s24
      %p36 = scmp.eq.s32.totalorder %s19, 1
      %p37 = por %p35, %p36
      %p39 = scmp.ne.s32.totalorder %s24, %s38
      %p40 = scmp.eq.s32.totalorder %s19, 0
      %p41 = por %p39, %p40
      %s43 = sadd.s32 %s42, 1
      %p46 = scmp.eq.s32.totalorder %s13, 1
      %p47 = scmp.ne.s32.totalorder %s42, %s44
      %p48 = scmp.eq.s32.totalorder %s13, 0
      %p49 = por %p47, %p48
      %p50 = scmp.ne.s32.totalorder %s42, %s44
      %p51 = scmp.eq.s32.totalorder %s18, 1
      %p52 = por %p50, %p51
      %p53 = scmp.ne.s32.totalorder %s44, %s45
      %p54 = scmp.eq.s32.totalorder %s18, 0
      %p55 = por %p53, %p54
      %p56 = scmp.ne.s32.totalorder %s44, %s45
      %p57 = scmp.eq.s32.totalorder %s19, 1
      %p58 = por %p56, %p57
      %p60 = scmp.ne.s32.totalorder %s45, %s59
      %p61 = scmp.eq.s32.totalorder %s19, 0
      %p62 = por %p60, %p61
      %s63 = ssub.s32 %s13, %s20
      %p64 = scmp.eq.s32.totalorder %s63, 0
      %s66 = sadd.s32 %s65, 1
      %s67 = scalar_select %p64, %s65, %s66
      %p70 = pneg %p64
      %p71 = scmp.eq.s32.totalorder %s13, 1
      %p72 = por %p70, %p71
      %p73 = scmp.ne.s32.totalorder %s65, %s68
      %p74 = scmp.eq.s32.totalorder %s13, 0
      %p75 = por %p73, %p74
      %p76 = scmp.ne.s32.totalorder %s65, %s68
      %p77 = scmp.eq.s32.totalorder %s18, 1
      %p78 = por %p76, %p77
      %p79 = scmp.ne.s32.totalorder %s68, %s69
      %p80 = scmp.eq.s32.totalorder %s18, 0
      %p81 = por %p79, %p80
      %p82 = scmp.ne.s32.totalorder %s68, %s69
      %p83 = scmp.eq.s32.totalorder %s19, 1
      %p84 = por %p82, %p83
      %p86 = scmp.ne.s32.totalorder %s69, %s85
      %p87 = scmp.eq.s32.totalorder %s19, 0
      %p88 = por %p86, %p87
      %s90 = sadd.s32 %s89, 1
      %p93 = scmp.eq.s32.totalorder %s13, 1
      %p94 = scmp.ne.s32.totalorder %s89, %s91
      %p95 = scmp.eq.s32.totalorder %s13, 0
      %p96 = por %p94, %p95
      %p97 = scmp.ne.s32.totalorder %s89, %s91
      %p98 = scmp.eq.s32.totalorder %s18, 1
      %p99 = por %p97, %p98
      %p100 = scmp.ne.s32.totalorder %s91, %s92
      %p101 = scmp.eq.s32.totalorder %s18, 0
      %p102 = por %p100, %p101
      %p103 = scmp.ne.s32.totalorder %s91, %s92
      %p104 = scmp.eq.s32.totalorder %s19, 1
      %p105 = por %p103, %p104
      %p107 = scmp.ne.s32.totalorder %s92, %s106
      %p108 = scmp.eq.s32.totalorder %s19, 0
      %p109 = por %p107, %p108
      %s110 = ssub.s32 %s13, %s20
      %p111 = scmp.eq.s32.totalorder %s110, 0
      %s113 = sadd.s32 %s112, 1
      %s114 = scalar_select %p111, %s112, %s113
      %p117 = pneg %p111
      %p118 = scmp.eq.s32.totalorder %s13, 1
      %p119 = por %p117, %p118
      %p120 = scmp.ne.s32.totalorder %s112, %s115
      %p121 = scmp.eq.s32.totalorder %s13, 0
      %p122 = por %p120, %p121
      %p123 = scmp.ne.s32.totalorder %s112, %s115
      %p124 = scmp.eq.s32.totalorder %s18, 1
      %p125 = por %p123, %p124
      %p126 = scmp.ne.s32.totalorder %s115, %s116
      %p127 = scmp.eq.s32.totalorder %s18, 0
      %p128 = por %p126, %p127
      %p129 = scmp.ne.s32.totalorder %s115, %s116
      %p130 = scmp.eq.s32.totalorder %s19, 1
      %p131 = por %p129, %p130
      %p133 = scmp.ne.s32.totalorder %s116, %s132
      %p134 = scmp.eq.s32.totalorder %s19, 0
      %p135 = por %p133, %p134
      %p136 = scmp.le.s32.totalorder 1, %s13
      %p137 = scmp.lt.s32.totalorder %s13, 3
      %p138 = pnand %p136, %p137
      %p139 = pneg %p138
      // Predicated region
      $region9: #{transition_up.3} parent=5 // pred_check
        _
      $region10: #{transition_up.3} parent=5 // pred_check_branch
        %141 = sbr.rel (%p138) target = $region12
      $region11: #{transition_up.3} parent=5 // pred_region
        %s142 = ssub.s32 %s13, 1
        // Predicated region
        $region13: #{transition_up.3} parent=11 // pred_check
          %p143 = pneg %p34
        $region14: #{transition_up.3} parent=11 // pred_check_branch
          %145 = sbr.rel (%p143) target = $region16
        $region15: #{transition_up.3} parent=11 // pred_region
          _
        $region16: #{transition_up.3} parent=11 // pred_fallthru
          _
        // Predicated region
        $region17: #{transition_up.3} parent=11 // pred_check
          %p146 = pneg %p55
        $region18: #{transition_up.3} parent=11 // pred_check_branch
          %148 = sbr.rel (%p146) target = $region20
        $region19: #{transition_up.3} parent=11 // pred_region
          _
        $region20: #{transition_up.3} parent=11 // pred_fallthru
          _
        // Predicated region
        $region21: #{transition_up.3} parent=11 // pred_check
          %p149 = pneg %p102
        $region22: #{transition_up.3} parent=11 // pred_check_branch
          %151 = sbr.rel (%p149) target = $region24
        $region23: #{transition_up.3} parent=11 // pred_region
          _
        $region24: #{transition_up.3} parent=11 // pred_fallthru
          _
      $region12: #{transition_up.3} parent=5 // pred_fallthru
        _
      %p152 = scmp.lt.s32.totalorder %s13, 2
      // Predicated region
      $region25: #{transition_up.3} parent=5 // pred_check
        %p153 = pneg %p152
      $region26: #{transition_up.3} parent=5 // pred_check_branch
        %155 = sbr.rel (%p153) target = $region28
      $region27: #{transition_up.3} parent=5 // pred_region
        // Predicated region
        $region29: #{transition_up.3} parent=27 // pred_check
          %p156 = pneg %p75
        $region30: #{transition_up.3} parent=27 // pred_check_branch
          %158 = sbr.rel (%p156) target = $region32
        $region31: #{transition_up.3} parent=27 // pred_region
          %s159 = smul.u32 2, %s13
          %p160 = scmp.lt.s32.totalorder %s159, 3
          %s161 = scalar_select %p160, %s159, 3
          %s162 = smul.addr %s161, 8
          %s163 = scalar_lea.vmem %s2, %s162
          %s164 = smul.u32 2, %s13
        $region32: #{transition_up.3} parent=27 // pred_fallthru
          _
      $region28: #{transition_up.3} parent=5 // pred_fallthru
        _
      %p165 = scmp.le.s32.totalorder 1, %s13
      %p166 = scmp.lt.s32.totalorder %s13, 3
      %p167 = pnand %p165, %p166
      %p168 = pneg %p167
      // Predicated region
      $region33: #{transition_up.3} parent=5 // pred_check
        _
      $region34: #{transition_up.3} parent=5 // pred_check_branch
        %170 = sbr.rel (%p167) target = $region36
      $region35: #{transition_up.3} parent=5 // pred_region
        %s171 = ssub.s32 %s13, 1
        %p172 = pneg %p34
        %p173 = pneg %p31
        %p174 = pneg %p55
        %p175 = pneg %p52
        %s176 = smul.u32 2, %s18
        %p177 = scmp.lt.s32.totalorder %s176, 3
        %s178 = scalar_select %p177, %s176, 3
        %s179 = smul.addr %s178, 8
        %s180 = scalar_lea.vmem %s2, %s179
        %p181 = pneg %p81
        %p182 = pneg %p78
        %p183 = pneg %p102
        %p184 = pneg %p99
        %p185 = pneg %p128
        %p186 = pneg %p125
        %s187 = sand.u32 %s115, 1
        %s188 = scalar_lea.sflag [#allocation3], %s187
        %s189 = sand.u32 %s115, 1
        %s190 = smul.addr %s189, 16
        %s191 = scalar_lea.vmem [#allocation2], %s190
        %s192 = smul.u32 2, %s18
        %p193 = scmp.lt.s32.totalorder %s192, 3
        %s194 = scalar_select %p193, %s192, 3
        %s195 = smul.addr %s194, 8
        %s196 = scalar_lea.vmem %s2, %s195
        %s197 = smul.u32 2, %s18
        %s198 = smul.u32 2, %s18
        %s199 = smul.u32 %s18, 16
        %v200 = vlaneseq
        %v201 = vshrl.u32 %v200, 7
        %v202 = vadd.s32 %v201, 8
        %v203 = vstv %s199
        %v204 = vadd.s32 %v203, %v201
        %v205 = vadd.s32 %v203, %v202
        %v206 = vld [vmem:[%s0] sm:$0x1]
        %v207 = vlaneseq
        %v208 = vshrl.u32 %v207, 7
        %v209 = vsub.s32 0, %v208
        %v210 = vrot.slane %v206, %v209
        %vm211 = vcmp.ge.s32.totalorder %v204, %v210
        %vm212 = vcmp.ge.s32.totalorder %v205, %v210
        %v213 = vld [vmem:[%s1] sm:$0x1]
        %v214 = vlaneseq
        %v215 = vshrl.u32 %v214, 7
        %v216 = vsub.s32 0, %v215
        %v217 = vrot.slane %v213, %v216
        %vm218 = vcmp.lt.s32.totalorder %v204, %v217
        %vm219 = vcmp.lt.s32.totalorder %v205, %v217
        %vm220 = vmand %vm211, %vm218
        %vm221 = vmand %vm212, %vm219
        %v222 = vsel %vm220, 1.0, 0.0
        %v223 = vsel %vm221, 1.0, 0.0
        %v224 = vld [vmem:[%s196] sm:$0xff]
        %v225 = vld [vmem:[%s196 + $0x8] sm:$0xff]
        %228 = vrot.lane.b32.xlu0 %v222, 32
        %v229 = vpop.permute.xlu0 %228
        %230 = vrot.lane.b32.xlu0 %v223, 32
        %v231 = vpop.permute.xlu0 %230
        %vm234 = vcmask 261120
        %v235 = vsel %vm234, %v224, %v229
        %v236 = vsel %vm234, %v225, %v231
        %v237 = vld [vmem:[%s3] sm:$0xff]
        %v238 = vld [vmem:[%s3 + $0x8] sm:$0xff]
        %v239 = vld [vmem:[%s3 + $0x10] sm:$0xff]
        %v240 = vld [vmem:[%s3 + $0x18] sm:$0xff]
        %v241 = vld [vmem:[%s3 + $0x20] sm:$0x3]
        %vm242 = vcmask 277504
        %v244 = vsel %vm242, %v235, 0
        %v247 = vsel %vm242, %v236, 0
        %vm249 = vcmask 1041408
        %v251 = vsel %vm249, %v241, 0
        %253 = vmatprep.subr.mxu0 0.0
        %254 = vmatpush1.msra.mxu0 %v237
        %255 = vmatprep.subr.mxu0 0.0
        %256 = vmatpush1.msra.mxu0 %v238
        %257 = vmatprep.subr.mxu0 0.0
        %258 = vmatpush1.msra.mxu0 %v239
        %259 = vmatprep.subr.mxu0 0.0
        %260 = vmatpush1.msra.mxu0 %v240
        %261 = vmatprep.subr.mxu0 0.0
        %262 = vmatpush1.msra.mxu0 %v251
        %263 = vmatprep.subr.mxu0 0.0
        %264 = vmatpush1.msra.mxu0 0.0
        %265 = vmatprep.subr.mxu0 0.0
        %266 = vmatpush1.msra.mxu0 0.0
        %267 = vmatprep.subr.mxu0 0.0
        %268 = vmatpush1.msra.mxu0 0.0
        %269 = vmatprep.subr.mxu0 0.0
        %270 = vmatpush1.msra.mxu0 0.0
        %271 = vmatprep.subr.mxu0 0.0
        %272 = vmatpush1.msra.mxu0 0.0
        %273 = vmatprep.subr.mxu0 0.0
        %274 = vmatpush1.msra.mxu0 0.0
        %275 = vmatprep.subr.mxu0 0.0
        %276 = vmatpush1.msra.mxu0 0.0
        %277 = vmatprep.subr.mxu0 0.0
        %278 = vmatpush1.msra.mxu0 0.0
        %279 = vmatprep.subr.mxu0 0.0
        %280 = vmatpush1.msra.mxu0 0.0
        %281 = vmatprep.subr.mxu0 0.0
        %282 = vmatpush1.msra.mxu0 0.0
        %283 = vmatprep.subr.mxu0 0.0
        %284 = vmatpush1.msra.mxu0 0.0
        %285 = vmatprep.subr.mxu0 0.0
        %286 = vmatpush1.msra.mxu0 0.0
        %287 = vmatprep.subr.mxu0 0.0
        %288 = vmatpush1.msra.mxu0 0.0
        %289 = vmatprep.subr.mxu0 0.0
        %290 = vmatpush1.msra.mxu0 0.0
        %291 = vmatprep.subr.mxu0 0.0
        %292 = vmatpush1.msra.mxu0 0.0
        %293 = vmatprep.subr.mxu0 0.0
        %294 = vmatpush1.msra.mxu0 0.0
        %295 = vmatprep.subr.mxu0 0.0
        %296 = vmatpush1.msra.mxu0 0.0
        %297 = vmatprep.subr.mxu0 0.0
        %298 = vmatpush1.msra.mxu0 0.0
        %299 = vmatprep.subr.mxu0 0.0
        %300 = vmatpush1.msra.mxu0 0.0
        %301 = vmatprep.subr.mxu0 0.0
        %302 = vmatpush1.msra.mxu0 0.0
        %303 = vmatprep.subr.mxu0 0.0
        %304 = vmatpush1.msra.mxu0 0.0
        %305 = vmatprep.subr.mxu0 0.0
        %306 = vmatpush1.msra.mxu0 0.0
        %307 = vmatprep.subr.mxu0 0.0
        %308 = vmatpush1.msra.mxu0 0.0
        %309 = vmatprep.subr.mxu0 0.0
        %310 = vmatpush1.msra.mxu0 0.0
        %311 = vmatprep.subr.mxu0 0.0
        %312 = vmatpush1.msra.mxu0 0.0
        %313 = vmatprep.subr.mxu0 0.0
        %314 = vmatpush1.msra.mxu0 0.0
        %315 = vmatprep.subr.mxu0 0.0
        %316 = vmatpush1.msra.mxu0 0.0
        %317 = vmatprep.mubr.f32.mxu0 0.0
        %318 = vmatmul.mubr.f32.gmra.mrb[0].mxu0 %v244
        %v319 = vpop.f32.mrb[0].mxu0
        %v320 = vadd.f32 0.0, %v319
        %v321 = vpop.f32.mrb[0].mxu0
        %322 = vmatprep.mubr.f32.mxu0 0.0
        %323 = vmatmul.mubr.f32.gmra.mrb[0].mxu0 %v247
        %v324 = vpop.f32.mrb[0].mxu0
        %v325 = vadd.f32 0.0, %v324
        %v326 = vpop.f32.mrb[0].mxu0
        %327 = vdwg.mxu0
        %v328 = vmax.f32 %v320, 0.0
        %v329 = vmax.f32 %v325, 0.0
        %330 = vst.msk [vmem:[%s191] sm:$0xff] %vm234, %v328
        %331 = vst.msk [vmem:[%s191 + $0x8] sm:$0xff] %vm234, %v329
        %s332 = sand.u32 %s115, 1
        %s333 = scalar_lea.sflag [#allocation3], %s332
        %s334 = sand.u32 %s115, 1
        %s335 = smul.addr %s334, 16
        %s336 = scalar_lea.vmem [#allocation2], %s335
        // Predicated region
        $region37: #{transition_up.3} parent=35 // pred_check
          %p337 = pneg %p125
        $region38: #{transition_up.3} parent=35 // pred_check_branch
          %339 = sbr.rel (%p337) target = $region40
        $region39: #{transition_up.3} parent=35 // pred_region
          %s340 = smul.u32 2, %s18
          %s342 = ssub.s32 256, 256
          %343 = vsyncadd %s333, %s342
          %s344 = smul.addr %s340, 128
          %s345 = scalar_lea.hbm %s4, %s344
          %s346 = sshll.u32 %s336, 4
          %s347 = int_to_ptr.vmem [resolvable:$true] %s346
          %352 = dma.vmem_to_hbm [thread:$0]  %s347, 256, %s345, %s333, 128, 128, 8
        $region40: #{transition_up.3} parent=35 // pred_fallthru
          _
      $region36: #{transition_up.3} parent=5 // pred_fallthru
        _
      %p353 = scmp.le.s32.totalorder 2, %s13
      // Predicated region
      $region41: #{transition_up.3} parent=5 // pred_check
        %p354 = pneg %p353
      $region42: #{transition_up.3} parent=5 // pred_check_branch
        %356 = sbr.rel (%p354) target = $region44
      $region43: #{transition_up.3} parent=5 // pred_region
        %s357 = ssub.s32 %s13, 2
        // Predicated region
        $region45: #{transition_up.3} parent=43 // pred_check
          %p358 = pneg %p131
        $region46: #{transition_up.3} parent=43 // pred_check_branch
          %360 = sbr.rel (%p358) target = $region48
        $region47: #{transition_up.3} parent=43 // pred_region
          %s361 = sand.u32 %s116, 1
          %s362 = scalar_lea.sflag [#allocation3], %s361
          %s363 = sand.u32 %s116, 1
          %s364 = smul.addr %s363, 16
          %s365 = scalar_lea.vmem [#allocation2], %s364
          %366 = dma.done %s362, 256
        $region48: #{transition_up.3} parent=43 // pred_fallthru
          _
      $region44: #{transition_up.3} parent=5 // pred_fallthru
        _
    $region6: #{transition_up.3} parent=1 // loop_footer
      %s17 = sadd.s32 1, %s13
    $region7: #{transition_up.3} parent=1 // loop_footer_branch
      %12 = sbr.rel target = $region3
    $region8: #{transition_up.3} parent=1 // loop_exit
      _
    %367 = vsyncpa [#allocation3], 1
    %s368 = scalar_lea.sflag [#allocation3], 1
    %369 = vsyncpa %s368, 1

</llo_original>
